<compile_context>
chip_gen: v6e
topology: v6e:2x2x1
jax: 0.10.0
libtpu: 0.0.40
codegen_flags: <defaults>
</compile_context>

<pallas_src>
import jax
import jax.numpy as jnp
from jax.experimental import pallas as pl
from jax.experimental.pallas import tpu as pltpu

C_IN = 12
C_OUT = 12

# ~2 MiB of x per grid step.  With C_IN == C_OUT the output tile is the same size,
# so double-buffered live tiles are ~4x this (~8 MiB): fits scoped VMEM on all gens.
_TILE_BYTES_TARGET = 2 << 20
_VMEM_LIMIT_BYTES = 32 << 20


def _make_kernel(nb):
    """Kernel over a (nb, C_IN, tl) x-tile -> (nb, C_OUT, tl) out-tile."""
    def kernel(w_ref, b_ref, x_ref, o_ref):
        w = w_ref[...]           # (C_OUT, C_IN), same dtype as x
        b = b_ref[...]           # (C_OUT, 1) f32, broadcasts along lanes
        # Unrolled per-image matmuls: no transposes, lane-dense stores, f32 accumulate.
        for i in range(nb):      # nb is a static Python int
            acc = jnp.dot(w, x_ref[i], preferred_element_type=jnp.float32)
            o_ref[i] = (acc + b).astype(o_ref.dtype)
    return kernel


def _pick_tiles(N, HW, dsize):
    """Pick (nb, tl): images per step and lane-tile width.

    Targets ~_TILE_BYTES_TARGET bytes of x per grid step so the ~0.35 us/step
    pipeline overhead is amortized, while keeping the output lane dim either
    128-aligned or the full H*W (no masked partial stores)."""
    lane_budget = max(128, _TILE_BYTES_TARGET // (C_IN * dsize))

    if HW <= lane_budget:
        tl = HW                      # whole spatial extent per step
    else:
        tl = None
        t = (lane_budget // 128) * 128
        while t >= 128:
            if HW % t == 0:
                tl = t
                break
            t -= 128
        if tl is None:
            tl = HW                  # fallback: one full-width block (still correct)

    # If one lane tile already covers all of H*W, stack images to fill the budget.
    nb = 1
    if tl == HW:
        per_image = max(1, HW * C_IN * dsize)
        max_nb = max(1, _TILE_BYTES_TARGET // per_image)
        for cand in range(min(N, max_nb), 0, -1):
            if N % cand == 0:        # keep the grid exact (no ragged batch block)
                nb = cand
                break
    return nb, tl


def conv1x1_pallas(x_chw, weight, bias):
    """x_chw: (N, C_IN, H*W).  weight: (C_OUT, C_IN).  bias: (C_OUT,)."""
    N, cin, HW = x_chw.shape
    assert cin == C_IN

    dsize = jnp.dtype(x_chw.dtype).itemsize
    nb, tl = _pick_tiles(N, HW, dsize)

    w = weight.astype(x_chw.dtype)                   # tiny; matches MXU operand dtype
    b = bias.reshape(C_OUT, 1).astype(jnp.float32)   # f32 bias add, broadcast on lanes

    return pl.pallas_call(
        _make_kernel(nb),
        out_shape=jax.ShapeDtypeStruct((N, C_OUT, HW), x_chw.dtype),
        grid_spec=pltpu.PrefetchScalarGridSpec(
            num_scalar_prefetch=0,
            grid=(N // nb, HW // tl),
            in_specs=[
                pl.BlockSpec((C_OUT, C_IN), lambda n, j: (0, 0)),    # weight, resident
                pl.BlockSpec((C_OUT, 1), lambda n, j: (0, 0)),       # bias, resident
                pl.BlockSpec((nb, C_IN, tl), lambda n, j: (n, 0, j)),
            ],
            out_specs=pl.BlockSpec((nb, C_OUT, tl), lambda n, j: (n, 0, j)),
        ),
        compiler_params=pltpu.CompilerParams(
            dimension_semantics=("parallel", "parallel"),
            vmem_limit_bytes=_VMEM_LIMIT_BYTES,
        ),
    )(w, b, x_chw)


def example_context_forward(x, x_prob, weight, bias):
    """Mirrors ExampleContext.forward. x: (N, 6, H, W), x_prob: (N, 12, H, W) NCHW.
    x only feeds the shape assert (as in the PyTorch module)."""
    assert x.shape[1] * 2 == x_prob.shape[1]
    N, C, H, W = x_prob.shape
    x_flat = x_prob.reshape(N, C, H * W)           # free reshape, no transpose
    y_flat = conv1x1_pallas(x_flat, weight, bias)  # (N, C_OUT, H*W), input dtype
    return y_flat.reshape(N, C_OUT, H, W)          # free reshape back to NCHW


if __name__ == "__main__":
    key = jax.random.PRNGKey(0)
    k1, k2, k3, k4 = jax.random.split(key, 4)

    N, H, W = 2, 16, 16
    x = jax.random.normal(k1, (N, C_IN // 2, H, W), dtype=jnp.float32)   # (2, 6, 16, 16)
    x_prob = jax.random.normal(k2, (N, C_IN, H, W), dtype=jnp.float32)   # (2, 12, 16, 16)

    # Deterministic parameter init (Conv2d(12,12,1,1): weight (12,12,1,1) squeezed, bias (12,))
    bound = 1.0 / jnp.sqrt(jnp.float32(C_IN))
    weight = jax.random.uniform(k3, (C_OUT, C_IN), jnp.float32, -bound, bound)
    bias = jax.random.uniform(k4, (C_OUT,), jnp.float32, -bound, bound)

    out = example_context_forward(x, x_prob, weight, bias)
    out = jax.block_until_ready(out)

    # Pure-JAX reference (1x1 conv == channel einsum + bias)
    ref = jnp.einsum("nchw,oc->nohw", x_prob, weight) + bias[None, :, None, None]
    assert out.shape == (N, C_OUT, H, W)
    assert out.dtype == x_prob.dtype
    assert jnp.allclose(out, ref, atol=1e-5, rtol=1e-5)

    print("KERNEL_OK")
</pallas_src>

<mosaic_0001>
module attributes {stable_mosaic.version = 11 : i64} {
  func.func @kernel(%arg0: i32, %arg1: i32, %arg2: memref<12x12xf32, #tpu.memory_space<vmem>>, %arg3: memref<12x1xf32, #tpu.memory_space<vmem>>, %arg4: memref<2x12x256xf32, #tpu.memory_space<vmem>>, %arg5: memref<2x12x256xf32, #tpu.memory_space<vmem>>) attributes {dimension_semantics = [#tpu.dimension_semantics<parallel>, #tpu.dimension_semantics<parallel>], iteration_bounds = array<i64: 1, 1>, scalar_prefetch = 0 : i64, scratch_operands = 0 : i64, tpu.core_type = #tpu.core_type<tc>, window_params = [{pipeline_mode = #tpu.pipeline_mode<synchronous>, transform_indices = @transform_0, window_bounds = array<i64: 12, 12>}, {pipeline_mode = #tpu.pipeline_mode<synchronous>, transform_indices = @transform_1, window_bounds = array<i64: 12, 1>}, {transform_indices = @transform_2, window_bounds = array<i64: 2, 12, 256>}, {transform_indices = @transform_3, window_bounds = array<i64: 2, 12, 256>}]} {
    %c0 = arith.constant 0 : index
    %c0_0 = arith.constant 0 : index
    %0 = vector.load %arg2[%c0, %c0_0] : memref<12x12xf32, #tpu.memory_space<vmem>>, vector<12x12xf32>
    %c0_1 = arith.constant 0 : index
    %c0_2 = arith.constant 0 : index
    %1 = vector.load %arg3[%c0_1, %c0_2] : memref<12x1xf32, #tpu.memory_space<vmem>>, vector<12x1xf32>
    %c0_3 = arith.constant 0 : index
    %c0_4 = arith.constant 0 : index
    %c0_5 = arith.constant 0 : index
    %2 = vector.load %arg4[%c0_3, %c0_4, %c0_5] : memref<2x12x256xf32, #tpu.memory_space<vmem>>, vector<1x12x256xf32>
    %3 = vector.shape_cast %2 : vector<1x12x256xf32> to vector<12x256xf32>
    %cst = arith.constant dense<0.000000e+00> : vector<12x256xf32>
    %4 = tpu.matmul %0, %3, %cst {dimension_numbers = #tpu.dot_dimension_numbers<[1], [0], [0], [1], [0, 0, 1, 1], [], []>} : vector<12x12xf32>, vector<12x256xf32>, vector<12x256xf32> -> vector<12x256xf32>
    %5 = vector.broadcast %1 : vector<12x1xf32> to vector<12x256xf32>
    %6 = arith.addf %4, %5 : vector<12x256xf32>
    %c0_6 = arith.constant 0 : index
    %c0_7 = arith.constant 0 : index
    %c0_8 = arith.constant 0 : index
    %7 = vector.load %arg5[%c0_6, %c0_7, %c0_8] : memref<2x12x256xf32, #tpu.memory_space<vmem>>, vector<1x12x256xf32>
    %8 = vector.shape_cast %7 : vector<1x12x256xf32> to vector<12x256xf32>
    %9 = vector.shape_cast %6 : vector<12x256xf32> to vector<1x12x256xf32>
    tpu.vector_store %arg5[%c0_6, %c0_7, %c0_8], %9 {strides = array<i32>} : memref<2x12x256xf32, #tpu.memory_space<vmem>>, vector<1x12x256xf32>,
    %c1 = arith.constant 1 : index
    %c0_9 = arith.constant 0 : index
    %c0_10 = arith.constant 0 : index
    %10 = vector.load %arg4[%c1, %c0_9, %c0_10] : memref<2x12x256xf32, #tpu.memory_space<vmem>>, vector<1x12x256xf32>
    %11 = vector.shape_cast %10 : vector<1x12x256xf32> to vector<12x256xf32>
    %cst_11 = arith.constant dense<0.000000e+00> : vector<12x256xf32>
    %12 = tpu.matmul %0, %11, %cst_11 {dimension_numbers = #tpu.dot_dimension_numbers<[1], [0], [0], [1], [0, 0, 1, 1], [], []>} : vector<12x12xf32>, vector<12x256xf32>, vector<12x256xf32> -> vector<12x256xf32>
    %13 = vector.broadcast %1 : vector<12x1xf32> to vector<12x256xf32>
    %14 = arith.addf %12, %13 : vector<12x256xf32>
    %c1_12 = arith.constant 1 : index
    %c0_13 = arith.constant 0 : index
    %c0_14 = arith.constant 0 : index
    %15 = vector.load %arg5[%c1_12, %c0_13, %c0_14] : memref<2x12x256xf32, #tpu.memory_space<vmem>>, vector<1x12x256xf32>
    %16 = vector.shape_cast %15 : vector<1x12x256xf32> to vector<12x256xf32>
    %17 = vector.shape_cast %14 : vector<12x256xf32> to vector<1x12x256xf32>
    tpu.vector_store %arg5[%c1_12, %c0_13, %c0_14], %17 {strides = array<i32>} : memref<2x12x256xf32, #tpu.memory_space<vmem>>, vector<1x12x256xf32>,
    return
  }
  func.func @transform_0(%arg0: i32, %arg1: i32) -> (i32, i32) {
    %c0_i32 = arith.constant 0 : i32
    %c0_i32_0 = arith.constant 0 : i32
    %c0_i32_1 = arith.constant 0 : i32
    return %c0_i32, %c0_i32_0 : i32, i32
  }
  func.func @transform_1(%arg0: i32, %arg1: i32) -> (i32, i32) {
    %c0_i32 = arith.constant 0 : i32
    %c0_i32_0 = arith.constant 0 : i32
    %c0_i32_1 = arith.constant 0 : i32
    return %c0_i32, %c0_i32_0 : i32, i32
  }
  func.func @transform_2(%arg0: i32, %arg1: i32) -> (i32, i32, i32) {
    %c0_i32 = arith.constant 0 : i32
    %c0_i32_0 = arith.constant 0 : i32
    return %arg0, %c0_i32, %arg1 : i32, i32, i32
  }
  func.func @transform_3(%arg0: i32, %arg1: i32) -> (i32, i32, i32) {
    %c0_i32 = arith.constant 0 : i32
    %c0_i32_0 = arith.constant 0 : i32
    return %arg0, %c0_i32, %arg1 : i32, i32, i32
  }
}

</mosaic_0001>

<llo_original>
// kernel: tpu_custom_call.1
$region0: #{tpu_custom_call.1}
  #allocation0 [shape = 'u32[]', space=smem, size = 0x4, offset = 0x4, fixed_abs, tag = 'smem constant byte address 0x4 - core index']
  #allocation1 [shape = 'u32[144,128]{1,0:T(1,128)}', space=vmem, size = 0x12000, scoped, tag = 'internal scratch']
  %s0 = inlined_call_operand.vmem [shape: f32[12,12], index: 0, kind: input, shape index: {}]
  %s1 = inlined_call_operand.vmem [shape: f32[12,1], index: 1, kind: input, shape index: {}]
  %s2 = inlined_call_operand.vmem [shape: f32[2,12,256], index: 2, kind: input, shape index: {}]
  %s3 = inlined_call_operand.vmem [shape: f32[2,12,256], index: 3, kind: output, shape index: {}]
  %s4 = sld [smem:[#allocation0]]
  $region22: #{tpu_custom_call.1} parent=0
    _
  %s6 = ssub.s32 1, %s4
  %s7 = scalar_select 0, %s6, %s4
  // Predicated region
  $region2: #{tpu_custom_call.1} parent=0 // pred_check
    _
  $region3: #{tpu_custom_call.1} parent=0 // pred_check_branch
    %9 = sbr.rel (0) target = $region5
  $region4: #{tpu_custom_call.1} parent=0 // pred_region
    _
  $region5: #{tpu_custom_call.1} parent=0 // pred_fallthru
    _
  // Predicated region
  $region6: #{tpu_custom_call.1} parent=0 // pred_check
    _
  $region7: #{tpu_custom_call.1} parent=0 // pred_check_branch
    %11 = sbr.rel (0) target = $region9
  $region8: #{tpu_custom_call.1} parent=0 // pred_region
    _
  $region9: #{tpu_custom_call.1} parent=0 // pred_fallthru
    _
  // Predicated region
  $region10: #{tpu_custom_call.1} parent=0 // pred_check
    _
  $region11: #{tpu_custom_call.1} parent=0 // pred_check_branch
    %13 = sbr.rel (0) target = $region13
  $region12: #{tpu_custom_call.1} parent=0 // pred_region
    _
  $region13: #{tpu_custom_call.1} parent=0 // pred_fallthru
    _
  %v14 = vld [vmem:[%s0] sm:$0xff]
  %v15 = vld [vmem:[%s0 + $0x8] sm:$0xf]
  %v16 = vld [vmem:[%s1] sm:$0xff]
  %v17 = vld [vmem:[%s1 + $0x8] sm:$0xf]
  %v18 = vld [vmem:[%s2] sm:$0xff]
  %v19 = vld [vmem:[%s2 + $0x8] sm:$0xff]
  %v20 = vld [vmem:[%s2 + $0x10] sm:$0xf]
  %v21 = vld [vmem:[%s2 + $0x18] sm:$0xf]
  %23 = vset.pattern.permute.xlu0 0
  %24 = vperm.xlu0 %23, %v16
  %v25 = vpop.permute.xlu0 %24
  %28 = vset.pattern.permute.xlu0 0
  %29 = vperm.xlu0 %28, %v17
  %v30 = vpop.permute.xlu0 %29
  %vm32 = vcmask 97280
  %v34 = vsel %vm32, %v14, 0
  %v37 = vsel %vm32, %v15, 0
  %vm39 = vcmask 1043456
  %v41 = vsel %vm39, %v20, 0
  %v44 = vsel %vm39, %v21, 0
  %46 = vmatprep.subr.mxu0 0.0
  %47 = vmatpush1.msra.mxu0 0.0
  %48 = vmatprep.subr.mxu0 0.0
  %49 = vmatpush1.msra.mxu0 0.0
  %50 = vmatprep.subr.mxu0 0.0
  %51 = vmatpush1.msra.mxu0 0.0
  %52 = vmatprep.subr.mxu0 0.0
  %53 = vmatpush1.msra.mxu0 0.0
  %54 = vmatprep.subr.mxu0 0.0
  %55 = vmatpush1.msra.mxu0 0.0
  %56 = vmatprep.subr.mxu0 0.0
  %57 = vmatpush1.msra.mxu0 0.0
  %58 = vmatprep.subr.mxu0 0.0
  %59 = vmatpush1.msra.mxu0 0.0
  %60 = vmatprep.subr.mxu0 0.0
  %61 = vmatpush1.msra.mxu0 0.0
  %62 = vmatprep.subr.mxu0 0.0
  %63 = vmatpush1.msra.mxu0 0.0
  %64 = vmatprep.subr.mxu0 0.0
  %65 = vmatpush1.msra.mxu0 0.0
  %66 = vmatprep.subr.mxu0 0.0
  %67 = vmatpush1.msra.mxu0 0.0
  %68 = vmatprep.subr.mxu0 0.0
  %69 = vmatpush1.msra.mxu0 0.0
  %70 = vmatprep.subr.mxu0 0.0
  %71 = vmatpush1.msra.mxu0 0.0
  %72 = vmatprep.subr.mxu0 0.0
  %73 = vmatpush1.msra.mxu0 0.0
  %74 = vmatprep.subr.mxu0 %v44
  %75 = vmatpush1.msra.mxu0 %v41
  %76 = vmatprep.subr.mxu0 %v19
  %77 = vmatpush1.msra.mxu0 %v18
  %78 = vmatprep.subr.mxu0 0.0
  %79 = vmatpush2.msra.mxu0 0.0
  %80 = vmatprep.subr.mxu0 0.0
  %81 = vmatpush2.msra.mxu0 0.0
  %82 = vmatprep.subr.mxu0 0.0
  %83 = vmatpush2.msra.mxu0 0.0
  %84 = vmatprep.subr.mxu0 0.0
  %85 = vmatpush2.msra.mxu0 0.0
  %86 = vmatprep.subr.mxu0 0.0
  %87 = vmatpush2.msra.mxu0 0.0
  %88 = vmatprep.subr.mxu0 0.0
  %89 = vmatpush2.msra.mxu0 0.0
  %90 = vmatprep.subr.mxu0 0.0
  %91 = vmatpush2.msra.mxu0 0.0
  %92 = vmatprep.subr.mxu0 0.0
  %93 = vmatpush2.msra.mxu0 0.0
  %94 = vmatprep.subr.mxu0 0.0
  %95 = vmatpush2.msra.mxu0 0.0
  %96 = vmatprep.subr.mxu0 0.0
  %97 = vmatpush2.msra.mxu0 0.0
  %98 = vmatprep.subr.mxu0 0.0
  %99 = vmatpush2.msra.mxu0 0.0
  %100 = vmatprep.subr.mxu0 0.0
  %101 = vmatpush2.msra.mxu0 0.0
  %102 = vmatprep.subr.mxu0 0.0
  %103 = vmatpush2.msra.mxu0 0.0
  %104 = vmatprep.subr.mxu0 0.0
  %105 = vmatpush2.msra.mxu0 0.0
  %106 = vmatprep.subr.mxu0 0.0
  %107 = vmatpush2.msra.mxu0 0.0
  %108 = vmatprep.subr.mxu0 0.0
  %109 = vmatpush2.msra.mxu0 0.0
  %110 = vmatprep.mubr.f32.mxu0 0.0
  %111 = vmatmul.mubr.f32.gmra.mxu0 %v34
  %v112 = vpop.f32.mrf.mxu0
  %v113 = vadd.f32 %v25, %v112
  %v114 = vpop.f32.mrf.mxu0
  %v115 = vadd.f32 %v25, %v114
  %116 = vmatprep.mubr.f32.mxu0 0.0
  %117 = vmatmul.mubr.f32.gmra.mxu0 %v37
  %v118 = vpop.f32.mrf.mxu0
  %v119 = vadd.f32 %v30, %v118
  %v120 = vpop.f32.mrf.mxu0
  %v121 = vadd.f32 %v30, %v120
  %122 = vdwg.mxu0
  %123 = vst [vmem:[%s3] sm:$0xff] %v113
  %124 = vst [vmem:[%s3 + $0x8] sm:$0xff] %v115
  %125 = vst [vmem:[%s3 + $0x10] sm:$0xf] %v119
  %126 = vst [vmem:[%s3 + $0x18] sm:$0xf] %v121
  %s127 = scalar_lea.vmem %s2, 32
  %v128 = vld [vmem:[%s127] sm:$0xff]
  %v129 = vld [vmem:[%s127 + $0x8] sm:$0xff]
  %v130 = vld [vmem:[%s127 + $0x10] sm:$0xf]
  %v131 = vld [vmem:[%s127 + $0x18] sm:$0xf]
  %v133 = vsel %vm39, %v130, 0
  %v136 = vsel %vm39, %v131, 0
  %138 = vmatprep.subr.mxu0 0.0
  %139 = vmatpush1.msra.mxu0 0.0
  %140 = vmatprep.subr.mxu0 0.0
  %141 = vmatpush1.msra.mxu0 0.0
  %142 = vmatprep.subr.mxu0 0.0
  %143 = vmatpush1.msra.mxu0 0.0
  %144 = vmatprep.subr.mxu0 0.0
  %145 = vmatpush1.msra.mxu0 0.0
  %146 = vmatprep.subr.mxu0 0.0
  %147 = vmatpush1.msra.mxu0 0.0
  %148 = vmatprep.subr.mxu0 0.0
  %149 = vmatpush1.msra.mxu0 0.0
  %150 = vmatprep.subr.mxu0 0.0
  %151 = vmatpush1.msra.mxu0 0.0
  %152 = vmatprep.subr.mxu0 0.0
  %153 = vmatpush1.msra.mxu0 0.0
  %154 = vmatprep.subr.mxu0 0.0
  %155 = vmatpush1.msra.mxu0 0.0
  %156 = vmatprep.subr.mxu0 0.0
  %157 = vmatpush1.msra.mxu0 0.0
  %158 = vmatprep.subr.mxu0 0.0
  %159 = vmatpush1.msra.mxu0 0.0
  %160 = vmatprep.subr.mxu0 0.0
  %161 = vmatpush1.msra.mxu0 0.0
  %162 = vmatprep.subr.mxu0 0.0
  %163 = vmatpush1.msra.mxu0 0.0
  %164 = vmatprep.subr.mxu0 0.0
  %165 = vmatpush1.msra.mxu0 0.0
  %166 = vmatprep.subr.mxu0 %v136
  %167 = vmatpush1.msra.mxu0 %v133
  %168 = vmatprep.subr.mxu0 %v129
  %169 = vmatpush1.msra.mxu0 %v128
  %170 = vmatprep.subr.mxu0 0.0
  %171 = vmatpush2.msra.mxu0 0.0
  %172 = vmatprep.subr.mxu0 0.0
  %173 = vmatpush2.msra.mxu0 0.0
  %174 = vmatprep.subr.mxu0 0.0
  %175 = vmatpush2.msra.mxu0 0.0
  %176 = vmatprep.subr.mxu0 0.0
  %177 = vmatpush2.msra.mxu0 0.0
  %178 = vmatprep.subr.mxu0 0.0
  %179 = vmatpush2.msra.mxu0 0.0
  %180 = vmatprep.subr.mxu0 0.0
  %181 = vmatpush2.msra.mxu0 0.0
  %182 = vmatprep.subr.mxu0 0.0
  %183 = vmatpush2.msra.mxu0 0.0
  %184 = vmatprep.subr.mxu0 0.0
  %185 = vmatpush2.msra.mxu0 0.0
  %186 = vmatprep.subr.mxu0 0.0
  %187 = vmatpush2.msra.mxu0 0.0
  %188 = vmatprep.subr.mxu0 0.0
  %189 = vmatpush2.msra.mxu0 0.0
  %190 = vmatprep.subr.mxu0 0.0
  %191 = vmatpush2.msra.mxu0 0.0
  %192 = vmatprep.subr.mxu0 0.0
  %193 = vmatpush2.msra.mxu0 0.0
  %194 = vmatprep.subr.mxu0 0.0
  %195 = vmatpush2.msra.mxu0 0.0
  %196 = vmatprep.subr.mxu0 0.0
  %197 = vmatpush2.msra.mxu0 0.0
  %198 = vmatprep.subr.mxu0 0.0
  %199 = vmatpush2.msra.mxu0 0.0
  %200 = vmatprep.subr.mxu0 0.0
  %201 = vmatpush2.msra.mxu0 0.0
  %202 = vmatprep.mubr.f32.mxu0 0.0
  %203 = vmatmul.mubr.f32.gmra.mxu0 %v34
  %v204 = vpop.f32.mrf.mxu0
  %v205 = vadd.f32 %v25, %v204
  %v206 = vpop.f32.mrf.mxu0
  %v207 = vadd.f32 %v25, %v206
  %208 = vmatprep.mubr.f32.mxu0 0.0
  %209 = vmatmul.mubr.f32.gmra.mxu0 %v37
  %v210 = vpop.f32.mrf.mxu0
  %v211 = vadd.f32 %v30, %v210
  %v212 = vpop.f32.mrf.mxu0
  %v213 = vadd.f32 %v30, %v212
  %214 = vdwg.mxu0
  %s215 = scalar_lea.vmem %s3, 32
  %216 = vst [vmem:[%s215] sm:$0xff] %v205
  %217 = vst [vmem:[%s215 + $0x8] sm:$0xff] %v207
  %218 = vst [vmem:[%s215 + $0x10] sm:$0xf] %v211
  %219 = vst [vmem:[%s215 + $0x18] sm:$0xf] %v213
  // Predicated region
  $region14: #{tpu_custom_call.1} parent=0 // pred_check
    _
  $region15: #{tpu_custom_call.1} parent=0 // pred_check_branch
    %221 = sbr.rel (0) target = $region17
  $region16: #{tpu_custom_call.1} parent=0 // pred_region
    _
  $region17: #{tpu_custom_call.1} parent=0 // pred_fallthru
    _
  // Predicated region
  $region18: #{tpu_custom_call.1} parent=0 // pred_check
    _
  $region19: #{tpu_custom_call.1} parent=0 // pred_check_branch
    %223 = sbr.rel (0) target = $region21
  $region20: #{tpu_custom_call.1} parent=0 // pred_region
    _
  $region21: #{tpu_custom_call.1} parent=0 // pred_fallthru
    _

</llo_original>
